<compile_context>
chip_gen: v6e
topology: v6e:2x2x1
jax: 0.10.0
libtpu: 0.0.40
codegen_flags: <defaults>
</compile_context>

<pallas_src>
import functools

import jax
import jax.numpy as jnp
from jax.experimental import pallas as pl
from jax.experimental.pallas import tpu as pltpu


def _generator_kernel(x_ref, w1_ref, b1_ref, w2_ref, b2_ref, o_ref):
    # Layer 1 (MXU): (tbp, P*L) @ (P*L, P*H) -> (tbp, P*H), f32 accumulation.
    h = jnp.dot(x_ref[...], w1_ref[...], preferred_element_type=jnp.float32)
    h = jnp.maximum(h + b1_ref[...], 0.0)                 # bias + ReLU (VPU)
    # Layer 2 (MXU): (tbp, P*H) @ (P*H, P*O) -> (tbp, P*O), natural
    # orientation -> no vxpose/relayout of h anywhere.
    y = jnp.dot(h, w2_ref[...], preferred_element_type=jnp.float32)
    o_ref[...] = jnp.tanh(y + b2_ref[...]).astype(o_ref.dtype)


def _round_up(n, m):
    return ((n + m - 1) // m) * m


@functools.partial(jax.jit, static_argnames=("batch_tile",))
def generator_forward(x, w1, b1, w2, b2, *, batch_tile=32768):
    """x: (B, latent_dim); w1: (15, latent_dim); b1: (15,); w2: (2, 15); b2: (2,).

    Returns (B, 2) float32.  x's dtype is used as the layer-1 operand dtype
    (pass bf16 x straight from its producer for the halved-HBM-read path).
    """
    B, L = x.shape
    H = w1.shape[0]        # 15
    O = w2.shape[0]        # 2

    # ---- lane packing: P samples per 128-lane row (free reshape, no copy) ----
    P = 128 // L if (0 < L <= 128 and 128 % L == 0) else 1
    while P > 1 and B % P:
        P //= 2            # keep the reshape copy-free; worst case P = 1

    Bp, PL, PH, PO = B // P, P * L, P * H, P * O
    xp = x.reshape(Bp, PL)                            # contiguous -> no HBM copy

    cd = x.dtype                                      # layer-1 MXU operand dtype
    eye = jnp.eye(P, dtype=jnp.float32)
    w1_blk = jnp.kron(eye, w1.T.astype(jnp.float32)).astype(cd)   # (P*L, P*H)
    w2_blk = jnp.kron(eye, w2.T.astype(jnp.float32))              # (P*H, P*O), f32
    b1_blk = jnp.tile(b1.astype(jnp.float32), P).reshape(1, PH)
    b2_blk = jnp.tile(b2.astype(jnp.float32), P).reshape(1, PO)

    # ---- tile selection: >= 2 grid steps when the batch allows it ----
    tbp_max = max(8, (max(batch_tile, P) // P) // 8 * 8)
    if Bp <= 8:
        tbp = Bp                                       # single small tile
    else:
        tbp = min(tbp_max, _round_up(pl.cdiv(Bp, 2), 8))
    num_tiles = pl.cdiv(Bp, tbp)                       # ragged tail handled by Pallas

    out_p = pl.pallas_call(
        _generator_kernel,
        out_shape=jax.ShapeDtypeStruct((Bp, PO), jnp.float32),
        grid=(num_tiles,),
        in_specs=[
            pl.BlockSpec((tbp, PL), lambda i: (i, 0)),   # x rides the pipeline
            pl.BlockSpec((PL, PH), lambda i: (0, 0)),    # resident weights (<64 KB)
            pl.BlockSpec((1, PH), lambda i: (0, 0)),
            pl.BlockSpec((PH, PO), lambda i: (0, 0)),
            pl.BlockSpec((1, PO), lambda i: (0, 0)),
        ],
        out_specs=pl.BlockSpec((tbp, PO), lambda i: (i, 0)),
        compiler_params=pltpu.CompilerParams(
            dimension_semantics=("parallel",),           # megacore on v7x
            vmem_limit_bytes=48 * 1024 * 1024,           # safe on 64 MiB v7x VMEM
        ),
    )(xp, w1_blk, b1_blk, w2_blk, b2_blk)

    return out_p.reshape(B, O)                           # contiguous -> no HBM copy


def init_params(key, latent_dim):
    """Deterministic parameter init (shapes match the PyTorch module)."""
    k1, k2, k3, k4 = jax.random.split(key, 4)
    bound1 = jnp.sqrt(6.0 / latent_dim)          # kaiming_uniform fan_in bound
    w1 = jax.random.uniform(k1, (15, latent_dim), jnp.float32, -bound1, bound1)
    bnd = 1.0 / jnp.sqrt(latent_dim)
    b1 = jax.random.uniform(k2, (15,), jnp.float32, -bnd, bnd)
    bound2 = 1.0 / jnp.sqrt(15.0)
    w2 = jax.random.uniform(k3, (2, 15), jnp.float32, -bound2, bound2)
    b2 = jax.random.uniform(k4, (2,), jnp.float32, -bound2, bound2)
    return w1, b1, w2, b2


def _reference(x, w1, b1, w2, b2):
    xf = x.astype(jnp.float32)
    return jnp.tanh(jnp.maximum(xf @ w1.T + b1, 0.0) @ w2.T + b2)


if __name__ == "__main__":
    latent_dim = 32
    batch = 8

    key = jax.random.PRNGKey(0)
    kx, kp = jax.random.split(key)
    x = jax.random.normal(kx, (batch, latent_dim), dtype=jnp.float32)
    w1, b1, w2, b2 = init_params(kp, latent_dim)
    ref = _reference(x, w1, b1, w2, b2)

    # f32 path, lane-packed (P=4), single tile.
    out = jax.block_until_ready(generator_forward(x, w1, b1, w2, b2))
    assert out.shape == (batch, 2)
    assert jnp.allclose(out, ref, atol=1e-4, rtol=1e-4)

    # bf16-x path: x arrives in bf16 from the "producer" (no in-wrapper cast of x).
    x_bf16 = x.astype(jnp.bfloat16)
    out_bf16 = jax.block_until_ready(generator_forward(x_bf16, w1, b1, w2, b2))
    assert jnp.allclose(out_bf16, ref, atol=2e-2, rtol=2e-2)

    # Multi-tile path with a ragged last block (no wrapper-side padding).
    x_big = jax.random.normal(jax.random.PRNGKey(1), (300, latent_dim),
                              dtype=jnp.float32)
    out_big = jax.block_until_ready(
        generator_forward(x_big, w1, b1, w2, b2, batch_tile=64))
    ref_big = _reference(x_big, w1, b1, w2, b2)
    assert out_big.shape == (300, 2)
    assert jnp.allclose(out_big, ref_big, atol=1e-4, rtol=1e-4)

    # Batch not divisible by 4 -> packing falls back to P=2 (still copy-free).
    x_odd = jax.random.normal(jax.random.PRNGKey(2), (10, latent_dim),
                              dtype=jnp.float32)
    out_odd = jax.block_until_ready(generator_forward(x_odd, w1, b1, w2, b2))
    assert jnp.allclose(out_odd, _reference(x_odd, w1, b1, w2, b2),
                        atol=1e-4, rtol=1e-4)

    print("KERNEL_OK")
</pallas_src>

<mosaic_0001>
module attributes {stable_mosaic.version = 11 : i64} {
  func.func @_generator_kernel(%arg0: i32, %arg1: memref<2x128xf32, #tpu.memory_space<vmem>>, %arg2: memref<128x60xf32, #tpu.memory_space<vmem>>, %arg3: memref<1x60xf32, #tpu.memory_space<vmem>>, %arg4: memref<60x8xf32, #tpu.memory_space<vmem>>, %arg5: memref<1x8xf32, #tpu.memory_space<vmem>>, %arg6: memref<2x8xf32, #tpu.memory_space<vmem>>) attributes {dimension_semantics = [#tpu.dimension_semantics<parallel>], iteration_bounds = array<i64: 1>, scalar_prefetch = 0 : i64, scratch_operands = 0 : i64, tpu.core_type = #tpu.core_type<tc>, window_params = [{transform_indices = @transform_0, window_bounds = array<i64: 2, 128>}, {pipeline_mode = #tpu.pipeline_mode<synchronous>, transform_indices = @transform_1, window_bounds = array<i64: 128, 60>}, {pipeline_mode = #tpu.pipeline_mode<synchronous>, transform_indices = @transform_2, window_bounds = array<i64: 1, 60>}, {pipeline_mode = #tpu.pipeline_mode<synchronous>, transform_indices = @transform_3, window_bounds = array<i64: 60, 8>}, {pipeline_mode = #tpu.pipeline_mode<synchronous>, transform_indices = @transform_4, window_bounds = array<i64: 1, 8>}, {transform_indices = @transform_5, window_bounds = array<i64: 2, 8>}]} {
    %c0 = arith.constant 0 : index
    %c0_0 = arith.constant 0 : index
    %0 = vector.load %arg1[%c0, %c0_0] : memref<2x128xf32, #tpu.memory_space<vmem>>, vector<2x128xf32>
    %c0_1 = arith.constant 0 : index
    %c0_2 = arith.constant 0 : index
    %1 = vector.load %arg2[%c0_1, %c0_2] : memref<128x60xf32, #tpu.memory_space<vmem>>, vector<128x60xf32>
    %cst = arith.constant dense<0.000000e+00> : vector<2x60xf32>
    %2 = tpu.matmul %0, %1, %cst {dimension_numbers = #tpu.dot_dimension_numbers<[1], [0], [0], [1], [0, 0, 1, 1], [], []>} : vector<2x128xf32>, vector<128x60xf32>, vector<2x60xf32> -> vector<2x60xf32>
    %c0_3 = arith.constant 0 : index
    %c0_4 = arith.constant 0 : index
    %3 = vector.load %arg3[%c0_3, %c0_4] : memref<1x60xf32, #tpu.memory_space<vmem>>, vector<1x60xf32>
    %4 = vector.broadcast %3 : vector<1x60xf32> to vector<2x60xf32>
    %5 = arith.addf %2, %4 : vector<2x60xf32>
    %cst_5 = arith.constant 0.000000e+00 : f32
    %6 = vector.broadcast %cst_5 : f32 to vector<2x60xf32>
    %7 = arith.maximumf %5, %6 : vector<2x60xf32>
    %c0_6 = arith.constant 0 : index
    %c0_7 = arith.constant 0 : index
    %8 = vector.load %arg4[%c0_6, %c0_7] : memref<60x8xf32, #tpu.memory_space<vmem>>, vector<60x8xf32>
    %cst_8 = arith.constant dense<0.000000e+00> : vector<2x8xf32>
    %9 = tpu.matmul %7, %8, %cst_8 {dimension_numbers = #tpu.dot_dimension_numbers<[1], [0], [0], [1], [0, 0, 1, 1], [], []>} : vector<2x60xf32>, vector<60x8xf32>, vector<2x8xf32> -> vector<2x8xf32>
    %c0_9 = arith.constant 0 : index
    %c0_10 = arith.constant 0 : index
    %10 = vector.load %arg5[%c0_9, %c0_10] : memref<1x8xf32, #tpu.memory_space<vmem>>, vector<1x8xf32>
    %11 = vector.broadcast %10 : vector<1x8xf32> to vector<2x8xf32>
    %12 = arith.addf %9, %11 : vector<2x8xf32>
    %13 = math.tanh %12 : vector<2x8xf32>
    %c0_11 = arith.constant 0 : index
    %c0_12 = arith.constant 0 : index
    %14 = vector.load %arg6[%c0_11, %c0_12] : memref<2x8xf32, #tpu.memory_space<vmem>>, vector<2x8xf32>
    tpu.vector_store %arg6[%c0_11, %c0_12], %13 {strides = array<i32>} : memref<2x8xf32, #tpu.memory_space<vmem>>, vector<2x8xf32>,
    return
  }
  func.func @transform_0(%arg0: i32) -> (i32, i32) {
    %c0_i32 = arith.constant 0 : i32
    %c0_i32_0 = arith.constant 0 : i32
    return %arg0, %c0_i32 : i32, i32
  }
  func.func @transform_1(%arg0: i32) -> (i32, i32) {
    %c0_i32 = arith.constant 0 : i32
    %c0_i32_0 = arith.constant 0 : i32
    %c0_i32_1 = arith.constant 0 : i32
    return %c0_i32, %c0_i32_0 : i32, i32
  }
  func.func @transform_2(%arg0: i32) -> (i32, i32) {
    %c0_i32 = arith.constant 0 : i32
    %c0_i32_0 = arith.constant 0 : i32
    %c0_i32_1 = arith.constant 0 : i32
    return %c0_i32, %c0_i32_0 : i32, i32
  }
  func.func @transform_3(%arg0: i32) -> (i32, i32) {
    %c0_i32 = arith.constant 0 : i32
    %c0_i32_0 = arith.constant 0 : i32
    %c0_i32_1 = arith.constant 0 : i32
    return %c0_i32, %c0_i32_0 : i32, i32
  }
  func.func @transform_4(%arg0: i32) -> (i32, i32) {
    %c0_i32 = arith.constant 0 : i32
    %c0_i32_0 = arith.constant 0 : i32
    %c0_i32_1 = arith.constant 0 : i32
    return %c0_i32, %c0_i32_0 : i32, i32
  }
  func.func @transform_5(%arg0: i32) -> (i32, i32) {
    %c0_i32 = arith.constant 0 : i32
    %c0_i32_0 = arith.constant 0 : i32
    return %arg0, %c0_i32 : i32, i32
  }
}

</mosaic_0001>

<llo_original>
// kernel: tile.13
$region0: #{tile.13}
  #allocation0 [shape = 's32[1]{0}', space=sflag, size = 0x4, scoped, tag = 'scoped memory for tile.13']
  %s0 = inlined_call_operand.vmem [shape: f32[15], index: 0, kind: input, shape index: {}]
  %s1 = inlined_call_operand.vmem [shape: f32[4,15], index: 1, kind: output, shape index: {}]
  // Predicated region
  $region2: #{tile.13} parent=0 // pred_check
    _
  $region3: #{tile.13} parent=0 // pred_check_branch
    %3 = sbr.rel (0) target = $region5
  $region4: #{tile.13} parent=0 // pred_region
    _
  $region5: #{tile.13} parent=0 // pred_fallthru
    _
  %v4 = vld [vmem:[%s0] ss:$0 sm:$0xff]
  %5 = vst [vmem:[%s1] sm:$0xf] %v4

// kernel: tile.14
$region0: #{tile.14}
  %s0 = inlined_call_operand.vmem [shape: f32[4,15], index: 0, kind: input, shape index: {}]
  %s1 = inlined_call_operand.vmem [shape: f32[1,60], index: 1, kind: output, shape index: {}]
  $region1: #{tile.14} parent=0
    #allocation0 [shape = 'u8[4096]{0}', space=vmem, size = 0x1000, scoped, tag = 'scoped mem for output reshape']
    #allocation1 [shape = 'u8[4096]{0}', space=vmem, size = 0x1000, scoped, tag = 'scoped mem for input reshape']
    %s3 = sshll.u32 1, 4
    %s4 = ssub.s32 %s3, 1
    %v5 = vld [vmem:[%s0] sm:%s4]
    %6 = vst [vmem:[#allocation1] sm:%s4] %v5
    %v7 = vld [vmem:[#allocation1] sm:$0x1]
    %vm8 = vcmask 121856
    %9 = vst.msk [vmem:[#allocation0] sm:$0x1] %vm8, %v7
    %s10 = scalar_lea.vmem [#allocation1], 3
    %v11 = vld [vmem:[%s10] sm:$0x1]
    %12 = vrot.lane.b32.xlu0 %v11, 45
    %v13 = vpop.permute.xlu0 %12
    %vm14 = vcmask 490856
    %15 = vst.msk [vmem:[#allocation0] sm:$0x1] %vm14, %v13
    %s16 = scalar_lea.vmem [#allocation1], 2
    %v17 = vld [vmem:[%s16] sm:$0x1]
    %18 = vrot.lane.b32.xlu0 %v17, 30
    %v19 = vpop.permute.xlu0 %18
    %vm20 = vcmask 367856
    %21 = vst.msk [vmem:[#allocation0] sm:$0x1] %vm20, %v19
    %s22 = scalar_lea.vmem [#allocation1], 1
    %v23 = vld [vmem:[%s22] sm:$0x1]
    %24 = vrot.lane.b32.xlu0 %v23, 15
    %v25 = vpop.permute.xlu0 %24
    %vm26 = vcmask 244856
    %27 = vst.msk [vmem:[#allocation0] sm:$0x1] %vm26, %v25
    %s29 = sshll.u32 1, 1
    %s30 = ssub.s32 %s29, 1
    %v32 = vld [vmem:[#allocation0] sm:%s30]
    %s33 = sshll.u32 1, 1
    %s34 = ssub.s32 %s33, 1
    %35 = vst [vmem:[%s1] sm:%s34] %v32

// kernel: tile.18
$region0: #{tile.18}
  #allocation0 [shape = 's32[1]{0}', space=sflag, size = 0x4, scoped, tag = 'scoped memory for tile.18']
  %s0 = inlined_call_operand.vmem [shape: f32[2], index: 0, kind: input, shape index: {}]
  %s1 = inlined_call_operand.vmem [shape: f32[4,2], index: 1, kind: output, shape index: {}]
  // Predicated region
  $region2: #{tile.18} parent=0 // pred_check
    _
  $region3: #{tile.18} parent=0 // pred_check_branch
    %3 = sbr.rel (0) target = $region5
  $region4: #{tile.18} parent=0 // pred_region
    _
  $region5: #{tile.18} parent=0 // pred_fallthru
    _
  %v4 = vld [vmem:[%s0] ss:$0 sm:$0xff]
  %5 = vst [vmem:[%s1] sm:$0xf] %v4

// kernel: tile.19
$region0: #{tile.19}
  %s0 = inlined_call_operand.vmem [shape: f32[4,2], index: 0, kind: input, shape index: {}]
  %s1 = inlined_call_operand.vmem [shape: f32[1,8], index: 1, kind: output, shape index: {}]
  $region1: #{tile.19} parent=0
    #allocation0 [shape = 'u8[4096]{0}', space=vmem, size = 0x1000, scoped, tag = 'scoped mem for output reshape']
    #allocation1 [shape = 'u8[4096]{0}', space=vmem, size = 0x1000, scoped, tag = 'scoped mem for input reshape']
    %s3 = sshll.u32 1, 4
    %s4 = ssub.s32 %s3, 1
    %v5 = vld [vmem:[%s0] sm:%s4]
    %6 = vst [vmem:[#allocation1] sm:%s4] %v5
    %v7 = vld [vmem:[#allocation1] sm:$0x1]
    %vm8 = vcmask 15360
    %9 = vst.msk [vmem:[#allocation0] sm:$0x1] %vm8, %v7
    %s10 = scalar_lea.vmem [#allocation1], 3
    %v11 = vld [vmem:[%s10] sm:$0x1]
    %12 = vrot.lane.b32.xlu0 %v11, 6
    %v13 = vpop.permute.xlu0 %12
    %vm14 = vcmask 64560
    %15 = vst.msk [vmem:[#allocation0] sm:$0x1] %vm14, %v13
    %s16 = scalar_lea.vmem [#allocation1], 2
    %v17 = vld [vmem:[%s16] sm:$0x1]
    %18 = vrot.lane.b32.xlu0 %v17, 4
    %v19 = vpop.permute.xlu0 %18
    %vm20 = vcmask 48160
    %21 = vst.msk [vmem:[#allocation0] sm:$0x1] %vm20, %v19
    %s22 = scalar_lea.vmem [#allocation1], 1
    %v23 = vld [vmem:[%s22] sm:$0x1]
    %24 = vrot.lane.b32.xlu0 %v23, 2
    %v25 = vpop.permute.xlu0 %24
    %vm26 = vcmask 31760
    %27 = vst.msk [vmem:[#allocation0] sm:$0x1] %vm26, %v25
    %s29 = sshll.u32 1, 1
    %s30 = ssub.s32 %s29, 1
    %v32 = vld [vmem:[#allocation0] sm:%s30]
    %s33 = sshll.u32 1, 1
    %s34 = ssub.s32 %s33, 1
    %35 = vst [vmem:[%s1] sm:%s34] %v32

// kernel: generator_forward.1
$region0: #{generator_forward.1}
  #allocation0 [shape = 'u32[]', space=smem, size = 0x4, offset = 0x4, fixed_abs, tag = 'smem constant byte address 0x4 - core index']
  #allocation1 [shape = 'u32[144,128]{1,0:T(1,128)}', space=vmem, size = 0x12000, scoped, tag = 'internal scratch']
  %s0 = inlined_call_operand.vmem [shape: f32[2,128], index: 0, kind: input, shape index: {}]
  %s1 = inlined_call_operand.vmem [shape: f32[128,60], index: 1, kind: input, shape index: {}]
  %s2 = inlined_call_operand.vmem [shape: f32[1,60], index: 2, kind: input, shape index: {}]
  %s3 = inlined_call_operand.vmem [shape: f32[60,8], index: 3, kind: input, shape index: {}]
  %s4 = inlined_call_operand.vmem [shape: f32[1,8], index: 4, kind: input, shape index: {}]
  %s5 = inlined_call_operand.vmem [shape: f32[2,8], index: 5, kind: output, shape index: {}]
  %s6 = sld [smem:[#allocation0]]
  $region30: #{generator_forward.1} parent=0
    _
  %s8 = ssub.s32 1, %s6
  %s9 = scalar_select 0, %s8, %s6
  // Predicated region
  $region2: #{generator_forward.1} parent=0 // pred_check
    _
  $region3: #{generator_forward.1} parent=0 // pred_check_branch
    %11 = sbr.rel (0) target = $region5
  $region4: #{generator_forward.1} parent=0 // pred_region
    _
  $region5: #{generator_forward.1} parent=0 // pred_fallthru
    _
  // Predicated region
  $region6: #{generator_forward.1} parent=0 // pred_check
    _
  $region7: #{generator_forward.1} parent=0 // pred_check_branch
    %13 = sbr.rel (0) target = $region9
  $region8: #{generator_forward.1} parent=0 // pred_region
    _
  $region9: #{generator_forward.1} parent=0 // pred_fallthru
    _
  // Predicated region
  $region10: #{generator_forward.1} parent=0 // pred_check
    _
  $region11: #{generator_forward.1} parent=0 // pred_check_branch
    %15 = sbr.rel (0) target = $region13
  $region12: #{generator_forward.1} parent=0 // pred_region
    _
  $region13: #{generator_forward.1} parent=0 // pred_fallthru
    _
  // Predicated region
  $region14: #{generator_forward.1} parent=0 // pred_check
    _
  $region15: #{generator_forward.1} parent=0 // pred_check_branch
    %17 = sbr.rel (0) target = $region17
  $region16: #{generator_forward.1} parent=0 // pred_region
    _
  $region17: #{generator_forward.1} parent=0 // pred_fallthru
    _
  // Predicated region
  $region18: #{generator_forward.1} parent=0 // pred_check
    _
  $region19: #{generator_forward.1} parent=0 // pred_check_branch
    %19 = sbr.rel (0) target = $region21
  $region20: #{generator_forward.1} parent=0 // pred_region
    _
  $region21: #{generator_forward.1} parent=0 // pred_fallthru
    _
  %v20 = vld [vmem:[%s0] sm:$0x3]
  %v21 = vld [vmem:[%s1] sm:$0xff]
  %v22 = vld [vmem:[%s1 + $0x8] sm:$0xff]
  %v23 = vld [vmem:[%s1 + $0x10] sm:$0xff]
  %v24 = vld [vmem:[%s1 + $0x18] sm:$0xff]
  %v25 = vld [vmem:[%s1 + $0x20] sm:$0xff]
  %v26 = vld [vmem:[%s1 + $0x28] sm:$0xff]
  %v27 = vld [vmem:[%s1 + $0x30] sm:$0xff]
  %v28 = vld [vmem:[%s1 + $0x38] sm:$0xff]
  %v29 = vld [vmem:[%s1 + $0x40] sm:$0xff]
  %v30 = vld [vmem:[%s1 + $0x48] sm:$0xff]
  %v31 = vld [vmem:[%s1 + $0x50] sm:$0xff]
  %v32 = vld [vmem:[%s1 + $0x58] sm:$0xff]
  %v33 = vld [vmem:[%s1 + $0x60] sm:$0xff]
  %v34 = vld [vmem:[%s1 + $0x68] sm:$0xff]
  %v35 = vld [vmem:[%s1 + $0x70] sm:$0xff]
  %v36 = vld [vmem:[%s1 + $0x78] sm:$0xff]
  %v37 = vld [vmem:[%s2] sm:$0x1]
  %v39 = vlaneseq
  %v40 = vshrl.u32 %v39, 7
  %v41 = vsub.s32 0, %v40
  %v42 = vrot.slane %v37, %v41
  %44 = vmatprep.subr.mxu0 0.0
  %45 = vmatpush1.msra.mxu0 %v36
  %46 = vmatprep.subr.mxu0 0.0
  %47 = vmatpush1.msra.mxu0 %v35
  %48 = vmatprep.subr.mxu0 0.0
  %49 = vmatpush1.msra.mxu0 %v34
  %50 = vmatprep.subr.mxu0 0.0
  %51 = vmatpush1.msra.mxu0 %v33
  %52 = vmatprep.subr.mxu0 0.0
  %53 = vmatpush1.msra.mxu0 %v32
  %54 = vmatprep.subr.mxu0 0.0
  %55 = vmatpush1.msra.mxu0 %v31
  %56 = vmatprep.subr.mxu0 0.0
  %57 = vmatpush1.msra.mxu0 %v30
  %58 = vmatprep.subr.mxu0 0.0
  %59 = vmatpush1.msra.mxu0 %v29
  %60 = vmatprep.subr.mxu0 0.0
  %61 = vmatpush1.msra.mxu0 %v28
  %62 = vmatprep.subr.mxu0 0.0
  %63 = vmatpush1.msra.mxu0 %v27
  %64 = vmatprep.subr.mxu0 0.0
  %65 = vmatpush1.msra.mxu0 %v26
  %66 = vmatprep.subr.mxu0 0.0
  %67 = vmatpush1.msra.mxu0 %v25
  %68 = vmatprep.subr.mxu0 0.0
  %69 = vmatpush1.msra.mxu0 %v24
  %70 = vmatprep.subr.mxu0 0.0
  %71 = vmatpush1.msra.mxu0 %v23
  %72 = vmatprep.subr.mxu0 0.0
  %73 = vmatpush1.msra.mxu0 %v22
  %74 = vmatprep.subr.mxu0 0.0
  %75 = vmatpush1.msra.mxu0 %v21
  %76 = vmatprep.subr.mxu0 0.0
  %77 = vmatpush2.msra.mxu0 0.0
  %78 = vmatprep.subr.mxu0 0.0
  %79 = vmatpush2.msra.mxu0 0.0
  %80 = vmatprep.subr.mxu0 0.0
  %81 = vmatpush2.msra.mxu0 0.0
  %82 = vmatprep.subr.mxu0 0.0
  %83 = vmatpush2.msra.mxu0 0.0
  %84 = vmatprep.subr.mxu0 0.0
  %85 = vmatpush2.msra.mxu0 0.0
  %86 = vmatprep.subr.mxu0 0.0
  %87 = vmatpush2.msra.mxu0 0.0
  %88 = vmatprep.subr.mxu0 0.0
  %89 = vmatpush2.msra.mxu0 0.0
  %90 = vmatprep.subr.mxu0 0.0
  %91 = vmatpush2.msra.mxu0 0.0
  %92 = vmatprep.subr.mxu0 0.0
  %93 = vmatpush2.msra.mxu0 0.0
  %94 = vmatprep.subr.mxu0 0.0
  %95 = vmatpush2.msra.mxu0 0.0
  %96 = vmatprep.subr.mxu0 0.0
  %97 = vmatpush2.msra.mxu0 0.0
  %98 = vmatprep.subr.mxu0 0.0
  %99 = vmatpush2.msra.mxu0 0.0
  %100 = vmatprep.subr.mxu0 0.0
  %101 = vmatpush2.msra.mxu0 0.0
  %102 = vmatprep.subr.mxu0 0.0
  %103 = vmatpush2.msra.mxu0 0.0
  %104 = vmatprep.subr.mxu0 0.0
  %105 = vmatpush2.msra.mxu0 0.0
  %106 = vmatprep.subr.mxu0 0.0
  %107 = vmatpush2.msra.mxu0 0.0
  %108 = vmatprep.mubr.f32.mxu0 0.0
  %109 = vmatmul.mubr.f32.gmra.mxu0 %v20
  %v110 = vpop.f32.mrf.mxu0
  %v111 = vadd.f32 %v42, %v110
  %v112 = vpop.f32.mrf.mxu0
  %113 = vdwg.mxu0
  %v114 = vmax.f32 %v111, 0.0
  %v115 = vld [vmem:[%s3] sm:$0xff]
  %v116 = vld [vmem:[%s3 + $0x8] sm:$0xff]
  %v117 = vld [vmem:[%s3 + $0x10] sm:$0xff]
  %v118 = vld [vmem:[%s3 + $0x18] sm:$0xff]
  %v119 = vld [vmem:[%s3 + $0x20] sm:$0xff]
  %v120 = vld [vmem:[%s3 + $0x28] sm:$0xff]
  %v121 = vld [vmem:[%s3 + $0x30] sm:$0xff]
  %v122 = vld [vmem:[%s3 + $0x38] sm:$0xf]
  %v123 = vld [vmem:[%s4] sm:$0x1]
  %v125 = vlaneseq
  %v126 = vshrl.u32 %v125, 7
  %v127 = vsub.s32 0, %v126
  %v128 = vrot.slane %v123, %v127
  %vm130 = vcmask 490496
  %v132 = vsel %vm130, %v114, 0
  %vm134 = vcmask 1043456
  %v136 = vsel %vm134, %v122, 0
  %138 = vmatprep.subr.mxu0 0.0
  %139 = vmatpush1.msra.mxu0 0.0
  %140 = vmatprep.subr.mxu0 0.0
  %141 = vmatpush1.msra.mxu0 0.0
  %142 = vmatprep.subr.mxu0 0.0
  %143 = vmatpush1.msra.mxu0 0.0
  %144 = vmatprep.subr.mxu0 0.0
  %145 = vmatpush1.msra.mxu0 0.0
  %146 = vmatprep.subr.mxu0 0.0
  %147 = vmatpush1.msra.mxu0 0.0
  %148 = vmatprep.subr.mxu0 0.0
  %149 = vmatpush1.msra.mxu0 0.0
  %150 = vmatprep.subr.mxu0 0.0
  %151 = vmatpush1.msra.mxu0 0.0
  %152 = vmatprep.subr.mxu0 0.0
  %153 = vmatpush1.msra.mxu0 0.0
  %154 = vmatprep.subr.mxu0 0.0
  %155 = vmatpush1.msra.mxu0 %v136
  %156 = vmatprep.subr.mxu0 0.0
  %157 = vmatpush1.msra.mxu0 %v121
  %158 = vmatprep.subr.mxu0 0.0
  %159 = vmatpush1.msra.mxu0 %v120
  %160 = vmatprep.subr.mxu0 0.0
  %161 = vmatpush1.msra.mxu0 %v119
  %162 = vmatprep.subr.mxu0 0.0
  %163 = vmatpush1.msra.mxu0 %v118
  %164 = vmatprep.subr.mxu0 0.0
  %165 = vmatpush1.msra.mxu0 %v117
  %166 = vmatprep.subr.mxu0 0.0
  %167 = vmatpush1.msra.mxu0 %v116
  %168 = vmatprep.subr.mxu0 0.0
  %169 = vmatpush1.msra.mxu0 %v115
  %170 = vmatprep.subr.mxu0 0.0
  %171 = vmatpush2.msra.mxu0 0.0
  %172 = vmatprep.subr.mxu0 0.0
  %173 = vmatpush2.msra.mxu0 0.0
  %174 = vmatprep.subr.mxu0 0.0
  %175 = vmatpush2.msra.mxu0 0.0
  %176 = vmatprep.subr.mxu0 0.0
  %177 = vmatpush2.msra.mxu0 0.0
  %178 = vmatprep.subr.mxu0 0.0
  %179 = vmatpush2.msra.mxu0 0.0
  %180 = vmatprep.subr.mxu0 0.0
  %181 = vmatpush2.msra.mxu0 0.0
  %182 = vmatprep.subr.mxu0 0.0
  %183 = vmatpush2.msra.mxu0 0.0
  %184 = vmatprep.subr.mxu0 0.0
  %185 = vmatpush2.msra.mxu0 0.0
  %186 = vmatprep.subr.mxu0 0.0
  %187 = vmatpush2.msra.mxu0 0.0
  %188 = vmatprep.subr.mxu0 0.0
  %189 = vmatpush2.msra.mxu0 0.0
  %190 = vmatprep.subr.mxu0 0.0
  %191 = vmatpush2.msra.mxu0 0.0
  %192 = vmatprep.subr.mxu0 0.0
  %193 = vmatpush2.msra.mxu0 0.0
  %194 = vmatprep.subr.mxu0 0.0
  %195 = vmatpush2.msra.mxu0 0.0
  %196 = vmatprep.subr.mxu0 0.0
  %197 = vmatpush2.msra.mxu0 0.0
  %198 = vmatprep.subr.mxu0 0.0
  %199 = vmatpush2.msra.mxu0 0.0
  %200 = vmatprep.subr.mxu0 0.0
  %201 = vmatpush2.msra.mxu0 0.0
  %202 = vmatprep.mubr.f32.mxu0 0.0
  %203 = vmatmul.mubr.f32.gmra.mxu0 %v132
  %v204 = vpop.f32.mrf.mxu0
  %v205 = vadd.f32 %v128, %v204
  %v206 = vpop.f32.mrf.mxu0
  %207 = vdwg.mxu0
  %v208 = vtanh.pop %v205
  %vm209 = vcmask 58368
  %210 = vst.msk [vmem:[%s5] sm:$0x3] %vm209, %v208
  // Predicated region
  $region22: #{generator_forward.1} parent=0 // pred_check
    _
  $region23: #{generator_forward.1} parent=0 // pred_check_branch
    %212 = sbr.rel (0) target = $region25
  $region24: #{generator_forward.1} parent=0 // pred_region
    _
  $region25: #{generator_forward.1} parent=0 // pred_fallthru
    _
  // Predicated region
  $region26: #{generator_forward.1} parent=0 // pred_check
    _
  $region27: #{generator_forward.1} parent=0 // pred_check_branch
    %214 = sbr.rel (0) target = $region29
  $region28: #{generator_forward.1} parent=0 // pred_region
    _
  $region29: #{generator_forward.1} parent=0 // pred_fallthru
    _

</llo_original>
